<compile_context>
chip_gen: v6e
topology: v6e:2x2x1
jax: 0.10.0
libtpu: 0.0.40
codegen_flags: <defaults>
</compile_context>

<pallas_src>
import functools

import jax
import jax.numpy as jnp
from jax.experimental import pallas as pl
from jax.experimental.pallas import tpu as pltpu


LANE = 128     # last dim padded to a multiple of this (lane-dense stores)
SUBLANE = 8    # second-to-last dim padded to a multiple of this


def _round_up(n, m):
    return ((n + m - 1) // m) * m


def _largest_divisor_leq(n, k):
    k = max(1, min(n, k))
    while n % k:
        k -= 1
    return k


# ------------------------------ parameter prep -------------------------------

def init_params(key, hidden_size):
    """PyTorch nn.Linear-style init: U(-1/sqrt(fan_in), 1/sqrt(fan_in))."""
    bound = 1.0 / float(hidden_size) ** 0.5
    k = jax.random.split(key, 4)
    shp = (hidden_size, hidden_size)
    u = lambda kk, s: jax.random.uniform(kk, s, jnp.float32, -bound, bound)
    return {"wxh": u(k[0], shp), "b_xh": u(k[1], (hidden_size,)),
            "whh": u(k[2], shp), "b_hh": u(k[3], (hidden_size,))}


def prepare_params(params, *, weight_dtype=jnp.float32):
    """Done ONCE, outside the per-step / per-sequence call path:
      * transpose both weights (Linear stores [out, in]; kernels want [in, out]),
      * fuse the two biases into one [1, Hp] row,
      * zero-pad hidden to a multiple of 128 (full MXU tiles, lane-dense stores);
        zero weight padding guarantees padded lanes never contaminate real lanes,
      * optionally cast weights to bf16 (matmul inputs follow the weight dtype,
        accumulation stays f32)."""
    H = params["b_xh"].shape[0]
    Hp = _round_up(H, LANE)
    pad2 = lambda w: jnp.pad(w, ((0, Hp - H), (0, Hp - H)))
    return {
        "hidden": H,
        "hidden_padded": Hp,
        "wxh_t": pad2(params["wxh"].T).astype(weight_dtype),   # [Hp, Hp]
        "whh_t": pad2(params["whh"].T).astype(weight_dtype),   # [Hp, Hp]
        "b": jnp.pad(params["b_xh"] + params["b_hh"],
                     (0, Hp - H)).reshape(1, Hp).astype(jnp.float32),
    }


# --------------------------- single-step cell kernel -------------------------

def _rnn_cell_kernel(x_ref, h_ref, wxh_ref, whh_ref, b_ref, out_ref, *, activation):
    wx = wxh_ref[...]
    wh = whh_ref[...]
    acc = jnp.dot(h_ref[...].astype(wh.dtype), wh, preferred_element_type=jnp.float32)
    acc = acc + jnp.dot(x_ref[...].astype(wx.dtype), wx,
                        preferred_element_type=jnp.float32)
    acc = acc + b_ref[...]
    out_ref[...] = activation(acc).astype(out_ref.dtype)


def rnn_cell(x, h, prep, activation=jnp.tanh):
    """Single step; matches RNNCell.forward exactly.  x, h: [batch, hidden].

    Whole-VMEM small-shape version.  For sequences (or production hidden sizes)
    route through rnn_sequence, which tiles and keeps h resident across steps."""
    B, H = x.shape
    assert h.shape == (B, H) and H == prep["hidden"]
    Hp = prep["hidden_padded"]
    Bp = _round_up(B, SUBLANE)
    xp = jnp.pad(x, ((0, Bp - B), (0, Hp - H)))
    hp = jnp.pad(h, ((0, Bp - B), (0, Hp - H)))
    vmem = pl.BlockSpec(memory_space=pltpu.MemorySpace.VMEM)
    out = pl.pallas_call(
        functools.partial(_rnn_cell_kernel, activation=activation),
        out_shape=jax.ShapeDtypeStruct((Bp, Hp), x.dtype),
        in_specs=[vmem] * 5,
        out_specs=vmem,
    )(xp, hp, prep["wxh_t"], prep["whh_t"], prep["b"])
    return out[:B, :H]


# ------------------ phase 1: hoisted input projection kernel -----------------

def _input_proj_kernel(x_ref, w_ref, b_ref, o_ref):
    w = w_ref[...]
    o_ref[...] = (jnp.dot(x_ref[...].astype(w.dtype), w,
                          preferred_element_type=jnp.float32)
                  + b_ref[...])


def _input_projection(xs_p, wxh_t, b, rows_per_block):
    """xW = xs @ Wxh^T + b for ALL time steps as one tiled MXU matmul.
    xs_p: [T, Bp, Hp] (padded).  Output is f32 (exact add in the recurrence)."""
    T, Bp, Hp = xs_p.shape
    M = T * Bp
    x2 = xs_p.reshape(M, Hp)
    vmem = pl.BlockSpec(memory_space=pltpu.MemorySpace.VMEM)
    est = (Hp * Hp * wxh_t.dtype.itemsize + Hp * 4
           + 2 * rows_per_block * Hp * (xs_p.dtype.itemsize + 4))
    vmem_limit = min(128 * 1024 * 1024, max(32 * 1024 * 1024, 2 * est))
    out = pl.pallas_call(
        _input_proj_kernel,
        out_shape=jax.ShapeDtypeStruct((M, Hp), jnp.float32),
        grid=(M // rows_per_block,),
        in_specs=[pl.BlockSpec((rows_per_block, Hp), lambda i: (i, 0)),  # streamed
                  vmem,    # Wxh^T: resident, single buffer
                  vmem],   # fused bias: resident
        out_specs=pl.BlockSpec((rows_per_block, Hp), lambda i: (i, 0)),
        compiler_params=pltpu.CompilerParams(
            dimension_semantics=("parallel",),
            vmem_limit_bytes=vmem_limit),
    )(x2, wxh_t, b)
    return out.reshape(T, Bp, Hp)


# ------------------- phase 2: recurrence (time loop in kernel) ---------------

def _rnn_recurrence_kernel(xw_ref, h0_ref, whh_ref, hs_ref, h_scr, *,
                           time_chunk, activation):
    ti = pl.program_id(1)

    @pl.when(ti == 0)
    def _():
        h_scr[...] = h0_ref[...].astype(jnp.float32)

    w = whh_ref[...]                       # resident Whh^T, loaded once per chunk

    def step(t, h):
        # Only work that truly depends on h sits on the serial critical path.
        acc = jnp.dot(h.astype(w.dtype), w, preferred_element_type=jnp.float32)
        h_new = activation(acc + xw_ref[t])
        hs_ref[t] = h_new.astype(hs_ref.dtype)
        return h_new

    h_scr[...] = jax.lax.fori_loop(0, time_chunk, step, h_scr[...], unroll=True)


def rnn_sequence(xs, h0, prep, activation=jnp.tanh, *, time_chunk=8,
                 batch_block=8):
    """xs: [T, B, H], h0: [B, H] -> hs: [T, B, H] (hs[-1] is the final state).

    Phase 1: xW = xs @ Wxh^T + b for all T (one big tiled matmul, off the
    recurrence path).  Phase 2: one pallas_call over grid=(batch_blocks, T//TC);
    each grid step runs an unrolled TC-step loop doing only h @ Whh^T + xW_t,
    with h resident in a VMEM f32 scratch and Whh^T single-buffer resident."""
    T, B, H = xs.shape
    assert h0.shape == (B, H) and H == prep["hidden"]
    Hp = prep["hidden_padded"]
    Bp = _round_up(B, batch_block)
    BB = batch_block
    TC = _largest_divisor_leq(T, time_chunk)

    xs_p = jnp.pad(xs, ((0, 0), (0, Bp - B), (0, Hp - H)))
    h0_p = jnp.pad(h0, ((0, Bp - B), (0, Hp - H)))

    # Phase 1: hoisted input projection (no dependence on h).
    xw = _input_projection(xs_p, prep["wxh_t"], prep["b"], rows_per_block=TC * Bp)

    # Phase 2: VMEM budget = resident Whh^T + double-buffered xw/hs chunks
    #          + h0 block + f32 h scratch; 2x headroom, clamped.
    est = (Hp * Hp * prep["whh_t"].dtype.itemsize
           + 2 * TC * BB * Hp * 4                    # xw chunks (f32, double buf)
           + 2 * TC * BB * Hp * xs.dtype.itemsize    # hs chunks (double buf)
           + 2 * BB * Hp * h0_p.dtype.itemsize       # h0 block
           + BB * Hp * 4)                            # h scratch
    vmem_limit = min(128 * 1024 * 1024, max(32 * 1024 * 1024, 2 * est))

    grid_spec = pltpu.PrefetchScalarGridSpec(
        num_scalar_prefetch=0,
        grid=(Bp // BB, T // TC),                     # (parallel batch, serial time)
        in_specs=[
            pl.BlockSpec((TC, BB, Hp), lambda bi, ti: (ti, bi, 0)),   # xW, streamed
            pl.BlockSpec((BB, Hp), lambda bi, ti: (bi, 0)),           # h0 (read at ti==0)
            pl.BlockSpec(memory_space=pltpu.MemorySpace.VMEM),        # Whh^T, resident
        ],
        out_specs=pl.BlockSpec((TC, BB, Hp), lambda bi, ti: (ti, bi, 0)),
        scratch_shapes=[pltpu.VMEM((BB, Hp), jnp.float32)],
    )
    hs_p = pl.pallas_call(
        functools.partial(_rnn_recurrence_kernel, time_chunk=TC,
                          activation=activation),
        out_shape=jax.ShapeDtypeStruct((T, Bp, Hp), xs.dtype),
        grid_spec=grid_spec,
        compiler_params=pltpu.CompilerParams(
            dimension_semantics=("parallel", "arbitrary"),
            vmem_limit_bytes=vmem_limit),
    )(xw, h0_p, prep["whh_t"])
    return hs_p[:, :B, :H]


# --------------------------------- references --------------------------------

def rnn_cell_ref(x, h, params, activation=jnp.tanh):
    """Mirrors the PyTorch forward: activation(whh(h) + wxh(x))."""
    return activation(h @ params["whh"].T + params["b_hh"]
                      + x @ params["wxh"].T + params["b_xh"])


def rnn_sequence_ref(xs, h0, params, activation=jnp.tanh):
    def step(h, x):
        h_new = rnn_cell_ref(x, h, params, activation)
        return h_new, h_new
    _, hs = jax.lax.scan(step, h0, xs)
    return hs


if __name__ == "__main__":
    batch, hidden, seq = 5, 32, 8   # deliberately off the (8,128) grid:
                                    # wrappers pad B->8 and H->128 internally.

    key = jax.random.PRNGKey(0)
    kx, kh, kp, ks = jax.random.split(key, 4)
    x = jax.random.normal(kx, (batch, hidden), jnp.float32)
    h = jax.random.normal(kh, (batch, hidden), jnp.float32)
    xs = jax.random.normal(ks, (seq, batch, hidden), jnp.float32)
    params = init_params(kp, hidden)

    # f32 weights: tight check against the reference.
    prep32 = prepare_params(params)

    out = jax.block_until_ready(rnn_cell(x, h, prep32))
    ref = rnn_cell_ref(x, h, params)
    assert out.shape == (batch, hidden)
    assert jnp.allclose(out, ref, atol=1e-5, rtol=1e-5), "cell mismatch vs reference"

    hs = jax.block_until_ready(rnn_sequence(xs, h, prep32, time_chunk=4))
    hs_ref = rnn_sequence_ref(xs, h, params)
    assert hs.shape == (seq, batch, hidden)
    assert jnp.allclose(hs, hs_ref, atol=1e-5, rtol=1e-5), "sequence mismatch vs reference"

    # bf16 weights (f32 accumulation + f32 h carry): production-throughput path.
    prep_bf16 = prepare_params(params, weight_dtype=jnp.bfloat16)
    hs_bf16 = jax.block_until_ready(rnn_sequence(xs, h, prep_bf16, time_chunk=4))
    assert hs_bf16.shape == (seq, batch, hidden)
    assert float(jnp.max(jnp.abs(hs_bf16 - hs_ref))) < 0.1, "bf16 path too far off"

    print("KERNEL_OK")
</pallas_src>

<mosaic_0001>
module attributes {stable_mosaic.version = 11 : i64} {
  func.func @_rnn_cell_kernel(%arg0: memref<8x128xf32, #tpu.memory_space<vmem>>, %arg1: memref<8x128xf32, #tpu.memory_space<vmem>>, %arg2: memref<128x128xf32, #tpu.memory_space<vmem>>, %arg3: memref<128x128xf32, #tpu.memory_space<vmem>>, %arg4: memref<1x128xf32, #tpu.memory_space<vmem>>, %arg5: memref<8x128xf32, #tpu.memory_space<vmem>>) attributes {dimension_semantics = [], scalar_prefetch = 0 : i64, scratch_operands = 0 : i64, tpu.core_type = #tpu.core_type<tc>} {
    %c0 = arith.constant 0 : index
    %c0_0 = arith.constant 0 : index
    %0 = vector.load %arg2[%c0, %c0_0] : memref<128x128xf32, #tpu.memory_space<vmem>>, vector<128x128xf32>
    %c0_1 = arith.constant 0 : index
    %c0_2 = arith.constant 0 : index
    %1 = vector.load %arg3[%c0_1, %c0_2] : memref<128x128xf32, #tpu.memory_space<vmem>>, vector<128x128xf32>
    %c0_3 = arith.constant 0 : index
    %c0_4 = arith.constant 0 : index
    %2 = vector.load %arg1[%c0_3, %c0_4] : memref<8x128xf32, #tpu.memory_space<vmem>>, vector<8x128xf32>
    %cst = arith.constant dense<0.000000e+00> : vector<8x128xf32>
    %3 = tpu.matmul %2, %1, %cst {dimension_numbers = #tpu.dot_dimension_numbers<[1], [0], [0], [1], [0, 0, 1, 1], [], []>} : vector<8x128xf32>, vector<128x128xf32>, vector<8x128xf32> -> vector<8x128xf32>
    %c0_5 = arith.constant 0 : index
    %c0_6 = arith.constant 0 : index
    %4 = vector.load %arg0[%c0_5, %c0_6] : memref<8x128xf32, #tpu.memory_space<vmem>>, vector<8x128xf32>
    %cst_7 = arith.constant dense<0.000000e+00> : vector<8x128xf32>
    %5 = tpu.matmul %4, %0, %cst_7 {dimension_numbers = #tpu.dot_dimension_numbers<[1], [0], [0], [1], [0, 0, 1, 1], [], []>} : vector<8x128xf32>, vector<128x128xf32>, vector<8x128xf32> -> vector<8x128xf32>
    %6 = arith.addf %3, %5 : vector<8x128xf32>
    %c0_8 = arith.constant 0 : index
    %c0_9 = arith.constant 0 : index
    %7 = vector.load %arg4[%c0_8, %c0_9] : memref<1x128xf32, #tpu.memory_space<vmem>>, vector<1x128xf32>
    %8 = vector.broadcast %7 : vector<1x128xf32> to vector<8x128xf32>
    %9 = arith.addf %6, %8 : vector<8x128xf32>
    %10 = math.tanh %9 : vector<8x128xf32>
    %c0_10 = arith.constant 0 : index
    %c0_11 = arith.constant 0 : index
    %11 = vector.load %arg5[%c0_10, %c0_11] : memref<8x128xf32, #tpu.memory_space<vmem>>, vector<8x128xf32>
    tpu.vector_store %arg5[%c0_10, %c0_11], %10 {strides = array<i32>} : memref<8x128xf32, #tpu.memory_space<vmem>>, vector<8x128xf32>,
    return
  }
}

</mosaic_0001>

<llo_original>
// kernel: tpu_custom_call.1
$region0: #{tpu_custom_call.1}
  #allocation0 [shape = 'u32[]', space=smem, size = 0x4, offset = 0x4, fixed_abs, tag = 'smem constant byte address 0x4 - core index']
  #allocation1 [shape = 'u32[144,128]{1,0:T(1,128)}', space=vmem, size = 0x12000, scoped, tag = 'internal scratch']
  %s0 = inlined_call_operand.hbm [shape: f32[8,128], index: 0, kind: input, shape index: {}]
  %s1 = inlined_call_operand.hbm [shape: f32[8,128], index: 1, kind: input, shape index: {}]
  %s2 = inlined_call_operand.hbm [shape: f32[128,128], index: 2, kind: input, shape index: {}]
  %s3 = inlined_call_operand.hbm [shape: f32[128,128], index: 3, kind: input, shape index: {}]
  %s4 = inlined_call_operand.vmem [shape: f32[1,128], index: 4, kind: input, shape index: {}]
  %s5 = inlined_call_operand.hbm [shape: f32[8,128], index: 5, kind: output, shape index: {}]
  %s6 = sld [smem:[#allocation0]]
  $region46: #{tpu_custom_call.1} parent=0
    _
  %s8 = ssub.s32 1, %s6
  %s9 = scalar_select 0, %s8, %s6
  $region1: #{tpu_custom_call.1} parent=0
    #allocation2 [shape = 'u8[4096]{0}', space=vmem, size = 0x1000, scoped, tag = 'input window, operand 0, single buffered']
    #allocation3 [shape = 's32[1]{0}', space=sflag, size = 0x4, scoped, tag = 'scoped memory for tpu_custom_call.1']
    #allocation4 [shape = 's32[1]{0}', space=sflag, size = 0x4, scoped, tag = 'scoped memory for tpu_custom_call.1']
    #allocation5 [shape = 'u8[4096]{0}', space=vmem, size = 0x1000, scoped, tag = 'input window, operand 1, single buffered']
    #allocation6 [shape = 's32[1]{0}', space=sflag, size = 0x4, scoped, tag = 'scoped memory for tpu_custom_call.1']
    #allocation7 [shape = 'u8[65536]{0}', space=vmem, size = 0x10000, scoped, tag = 'input window, operand 2, single buffered']
    #allocation8 [shape = 'u8[65536]{0}', space=vmem, size = 0x10000, scoped, tag = 'input window, operand 3, single buffered']
    #allocation9 [shape = 's32[1]{0}', space=sflag, size = 0x4, scoped, tag = 'scoped memory for tpu_custom_call.1']
    #allocation10 [shape = 'u8[4096]{0}', space=vmem, size = 0x1000, scoped, tag = 'output window, operand 0, single buffered']
    %10 = vsyncpa [#allocation3], 0
    %11 = vsyncpa [#allocation6], 0
    %12 = vsyncpa [#allocation9], 0
    %13 = vsyncpa [#allocation4], 0
    // Predicated region
    $region2: #{tpu_custom_call.1} parent=1 // pred_check
      _
    $region3: #{tpu_custom_call.1} parent=1 // pred_check_branch
      %15 = sbr.rel (0) target = $region5
    $region4: #{tpu_custom_call.1} parent=1 // pred_region
      %s17 = ssub.s32 128, 128
      %18 = vsyncadd [#allocation3], %s17
      %s20 = sshll.u32 [#allocation2], 4
      %s21 = int_to_ptr.vmem [resolvable:$true] %s20
      %23 = dma.hbm_to_vmem [thread:$0]  %s0, 128, %s21, [#allocation3]
    $region5: #{tpu_custom_call.1} parent=1 // pred_fallthru
      _
    // Predicated region
    $region6: #{tpu_custom_call.1} parent=1 // pred_check
      _
    $region7: #{tpu_custom_call.1} parent=1 // pred_check_branch
      %25 = sbr.rel (0) target = $region9
    $region8: #{tpu_custom_call.1} parent=1 // pred_region
      %s27 = ssub.s32 128, 128
      %28 = vsyncadd [#allocation6], %s27
      %s30 = sshll.u32 [#allocation5], 4
      %s31 = int_to_ptr.vmem [resolvable:$true] %s30
      %33 = dma.hbm_to_vmem [thread:$0]  %s1, 128, %s31, [#allocation6]
    $region9: #{tpu_custom_call.1} parent=1 // pred_fallthru
      _
    // Predicated region
    $region10: #{tpu_custom_call.1} parent=1 // pred_check
      _
    $region11: #{tpu_custom_call.1} parent=1 // pred_check_branch
      %35 = sbr.rel (0) target = $region13
    $region12: #{tpu_custom_call.1} parent=1 // pred_region
      %s37 = ssub.s32 2048, 2048
      %38 = vsyncadd [#allocation6], %s37
      %s39 = sshll.u32 [#allocation7], 4
      %s40 = int_to_ptr.vmem [resolvable:$true] %s39
      %45 = dma.hbm_to_vmem [thread:$0]  %s2, 2048, %s40, [#allocation6], 128, 128, 8
    $region13: #{tpu_custom_call.1} parent=1 // pred_fallthru
      _
    // Predicated region
    $region14: #{tpu_custom_call.1} parent=1 // pred_check
      _
    $region15: #{tpu_custom_call.1} parent=1 // pred_check_branch
      %47 = sbr.rel (0) target = $region17
    $region16: #{tpu_custom_call.1} parent=1 // pred_region
      %s49 = ssub.s32 2048, 2048
      %50 = vsyncadd [#allocation9], %s49
      %s51 = sshll.u32 [#allocation8], 4
      %s52 = int_to_ptr.vmem [resolvable:$true] %s51
      %57 = dma.hbm_to_vmem [thread:$0]  %s3, 2048, %s52, [#allocation9], 128, 128, 8
    $region17: #{tpu_custom_call.1} parent=1 // pred_fallthru
      _
    // Predicated region
    $region18: #{tpu_custom_call.1} parent=1 // pred_check
      _
    $region19: #{tpu_custom_call.1} parent=1 // pred_check_branch
      %59 = sbr.rel (0) target = $region21
    $region20: #{tpu_custom_call.1} parent=1 // pred_region
      _
    $region21: #{tpu_custom_call.1} parent=1 // pred_fallthru
      _
    // Predicated region
    $region22: #{tpu_custom_call.1} parent=1 // pred_check
      _
    $region23: #{tpu_custom_call.1} parent=1 // pred_check_branch
      %61 = sbr.rel (0) target = $region25
    $region24: #{tpu_custom_call.1} parent=1 // pred_region
      %62 = dma.done [#allocation3], 128
    $region25: #{tpu_custom_call.1} parent=1 // pred_fallthru
      _
    // Predicated region
    $region26: #{tpu_custom_call.1} parent=1 // pred_check
      _
    $region27: #{tpu_custom_call.1} parent=1 // pred_check_branch
      %64 = sbr.rel (0) target = $region29
    $region28: #{tpu_custom_call.1} parent=1 // pred_region
      %65 = dma.done [#allocation6], 128
    $region29: #{tpu_custom_call.1} parent=1 // pred_fallthru
      _
    // Predicated region
    $region30: #{tpu_custom_call.1} parent=1 // pred_check
      _
    $region31: #{tpu_custom_call.1} parent=1 // pred_check_branch
      %67 = sbr.rel (0) target = $region33
    $region32: #{tpu_custom_call.1} parent=1 // pred_region
      %68 = dma.done [#allocation6], 2048
    $region33: #{tpu_custom_call.1} parent=1 // pred_fallthru
      _
    // Predicated region
    $region34: #{tpu_custom_call.1} parent=1 // pred_check
      _
    $region35: #{tpu_custom_call.1} parent=1 // pred_check_branch
      %70 = sbr.rel (0) target = $region37
    $region36: #{tpu_custom_call.1} parent=1 // pred_region
      %71 = dma.done [#allocation9], 2048
    $region37: #{tpu_custom_call.1} parent=1 // pred_fallthru
      _
    %v72 = vld [vmem:[#allocation7] sm:$0xff]
    %v73 = vld [vmem:[#allocation7 + $0x8] sm:$0xff]
    %v74 = vld [vmem:[#allocation7 + $0x10] sm:$0xff]
    %v75 = vld [vmem:[#allocation7 + $0x18] sm:$0xff]
    %v76 = vld [vmem:[#allocation7 + $0x20] sm:$0xff]
    %v77 = vld [vmem:[#allocation7 + $0x28] sm:$0xff]
    %v78 = vld [vmem:[#allocation7 + $0x30] sm:$0xff]
    %v79 = vld [vmem:[#allocation7 + $0x38] sm:$0xff]
    %v80 = vld [vmem:[#allocation7 + $0x40] sm:$0xff]
    %v81 = vld [vmem:[#allocation7 + $0x48] sm:$0xff]
    %v82 = vld [vmem:[#allocation7 + $0x50] sm:$0xff]
    %v83 = vld [vmem:[#allocation7 + $0x58] sm:$0xff]
    %v84 = vld [vmem:[#allocation7 + $0x60] sm:$0xff]
    %v85 = vld [vmem:[#allocation7 + $0x68] sm:$0xff]
    %v86 = vld [vmem:[#allocation7 + $0x70] sm:$0xff]
    %v87 = vld [vmem:[#allocation7 + $0x78] sm:$0xff]
    %v88 = vld [vmem:[#allocation8] sm:$0xff]
    %v89 = vld [vmem:[#allocation8 + $0x8] sm:$0xff]
    %v90 = vld [vmem:[#allocation8 + $0x10] sm:$0xff]
    %v91 = vld [vmem:[#allocation8 + $0x18] sm:$0xff]
    %v92 = vld [vmem:[#allocation8 + $0x20] sm:$0xff]
    %v93 = vld [vmem:[#allocation8 + $0x28] sm:$0xff]
    %v94 = vld [vmem:[#allocation8 + $0x30] sm:$0xff]
    %v95 = vld [vmem:[#allocation8 + $0x38] sm:$0xff]
    %v96 = vld [vmem:[#allocation8 + $0x40] sm:$0xff]
    %v97 = vld [vmem:[#allocation8 + $0x48] sm:$0xff]
    %v98 = vld [vmem:[#allocation8 + $0x50] sm:$0xff]
    %v99 = vld [vmem:[#allocation8 + $0x58] sm:$0xff]
    %v100 = vld [vmem:[#allocation8 + $0x60] sm:$0xff]
    %v101 = vld [vmem:[#allocation8 + $0x68] sm:$0xff]
    %v102 = vld [vmem:[#allocation8 + $0x70] sm:$0xff]
    %v103 = vld [vmem:[#allocation8 + $0x78] sm:$0xff]
    %v104 = vld [vmem:[#allocation5] sm:$0xff]
    %v105 = vld [vmem:[#allocation2] sm:$0xff]
    %106 = vmatprep.subr.mxu0 0.0
    %107 = vmatpush1.msra.mxu0 %v87
    %108 = vmatprep.subr.mxu0 0.0
    %109 = vmatpush1.msra.mxu0 %v86
    %110 = vmatprep.subr.mxu0 0.0
    %111 = vmatpush1.msra.mxu0 %v85
    %112 = vmatprep.subr.mxu0 0.0
    %113 = vmatpush1.msra.mxu0 %v84
    %114 = vmatprep.subr.mxu0 0.0
    %115 = vmatpush1.msra.mxu0 %v83
    %116 = vmatprep.subr.mxu0 0.0
    %117 = vmatpush1.msra.mxu0 %v82
    %118 = vmatprep.subr.mxu0 0.0
    %119 = vmatpush1.msra.mxu0 %v81
    %120 = vmatprep.subr.mxu0 0.0
    %121 = vmatpush1.msra.mxu0 %v80
    %122 = vmatprep.subr.mxu0 0.0
    %123 = vmatpush1.msra.mxu0 %v79
    %124 = vmatprep.subr.mxu0 0.0
    %125 = vmatpush1.msra.mxu0 %v78
    %126 = vmatprep.subr.mxu0 0.0
    %127 = vmatpush1.msra.mxu0 %v77
    %128 = vmatprep.subr.mxu0 0.0
    %129 = vmatpush1.msra.mxu0 %v76
    %130 = vmatprep.subr.mxu0 0.0
    %131 = vmatpush1.msra.mxu0 %v75
    %132 = vmatprep.subr.mxu0 0.0
    %133 = vmatpush1.msra.mxu0 %v74
    %134 = vmatprep.subr.mxu0 0.0
    %135 = vmatpush1.msra.mxu0 %v73
    %136 = vmatprep.subr.mxu0 0.0
    %137 = vmatpush1.msra.mxu0 %v72
    %138 = vmatprep.subr.mxu0 0.0
    %139 = vmatpush2.msra.mxu0 0.0
    %140 = vmatprep.subr.mxu0 0.0
    %141 = vmatpush2.msra.mxu0 0.0
    %142 = vmatprep.subr.mxu0 0.0
    %143 = vmatpush2.msra.mxu0 0.0
    %144 = vmatprep.subr.mxu0 0.0
    %145 = vmatpush2.msra.mxu0 0.0
    %146 = vmatprep.subr.mxu0 0.0
    %147 = vmatpush2.msra.mxu0 0.0
    %148 = vmatprep.subr.mxu0 0.0
    %149 = vmatpush2.msra.mxu0 0.0
    %150 = vmatprep.subr.mxu0 0.0
    %151 = vmatpush2.msra.mxu0 0.0
    %152 = vmatprep.subr.mxu0 0.0
    %153 = vmatpush2.msra.mxu0 0.0
    %154 = vmatprep.subr.mxu0 0.0
    %155 = vmatpush2.msra.mxu0 0.0
    %156 = vmatprep.subr.mxu0 0.0
    %157 = vmatpush2.msra.mxu0 0.0
    %158 = vmatprep.subr.mxu0 0.0
    %159 = vmatpush2.msra.mxu0 0.0
    %160 = vmatprep.subr.mxu0 0.0
    %161 = vmatpush2.msra.mxu0 0.0
    %162 = vmatprep.subr.mxu0 0.0
    %163 = vmatpush2.msra.mxu0 0.0
    %164 = vmatprep.subr.mxu0 0.0
    %165 = vmatpush2.msra.mxu0 0.0
    %166 = vmatprep.subr.mxu0 0.0
    %167 = vmatpush2.msra.mxu0 0.0
    %168 = vmatprep.subr.mxu0 0.0
    %169 = vmatpush2.msra.mxu0 0.0
    %170 = vmatprep.mubr.f32.mxu0 0.0
    %171 = vmatmul.mubr.f32.gmra.mxu0 %v105
    %v172 = vpop.f32.mrf.mxu0
    %v173 = vadd.f32 0.0, %v172
    %v174 = vpop.f32.mrf.mxu0
    %175 = vdwg.mxu0
    %176 = vmatprep.subr.mxu0 0.0
    %177 = vmatpush1.msra.mxu0 %v103
    %178 = vmatprep.subr.mxu0 0.0
    %179 = vmatpush1.msra.mxu0 %v102
    %180 = vmatprep.subr.mxu0 0.0
    %181 = vmatpush1.msra.mxu0 %v101
    %182 = vmatprep.subr.mxu0 0.0
    %183 = vmatpush1.msra.mxu0 %v100
    %184 = vmatprep.subr.mxu0 0.0
    %185 = vmatpush1.msra.mxu0 %v99
    %186 = vmatprep.subr.mxu0 0.0
    %187 = vmatpush1.msra.mxu0 %v98
    %188 = vmatprep.subr.mxu0 0.0
    %189 = vmatpush1.msra.mxu0 %v97
    %190 = vmatprep.subr.mxu0 0.0
    %191 = vmatpush1.msra.mxu0 %v96
    %192 = vmatprep.subr.mxu0 0.0
    %193 = vmatpush1.msra.mxu0 %v95
    %194 = vmatprep.subr.mxu0 0.0
    %195 = vmatpush1.msra.mxu0 %v94
    %196 = vmatprep.subr.mxu0 0.0
    %197 = vmatpush1.msra.mxu0 %v93
    %198 = vmatprep.subr.mxu0 0.0
    %199 = vmatpush1.msra.mxu0 %v92
    %200 = vmatprep.subr.mxu0 0.0
    %201 = vmatpush1.msra.mxu0 %v91
    %202 = vmatprep.subr.mxu0 0.0
    %203 = vmatpush1.msra.mxu0 %v90
    %204 = vmatprep.subr.mxu0 0.0
    %205 = vmatpush1.msra.mxu0 %v89
    %206 = vmatprep.subr.mxu0 0.0
    %207 = vmatpush1.msra.mxu0 %v88
    %208 = vmatprep.subr.mxu0 0.0
    %209 = vmatpush2.msra.mxu0 0.0
    %210 = vmatprep.subr.mxu0 0.0
    %211 = vmatpush2.msra.mxu0 0.0
    %212 = vmatprep.subr.mxu0 0.0
    %213 = vmatpush2.msra.mxu0 0.0
    %214 = vmatprep.subr.mxu0 0.0
    %215 = vmatpush2.msra.mxu0 0.0
    %216 = vmatprep.subr.mxu0 0.0
    %217 = vmatpush2.msra.mxu0 0.0
    %218 = vmatprep.subr.mxu0 0.0
    %219 = vmatpush2.msra.mxu0 0.0
    %220 = vmatprep.subr.mxu0 0.0
    %221 = vmatpush2.msra.mxu0 0.0
    %222 = vmatprep.subr.mxu0 0.0
    %223 = vmatpush2.msra.mxu0 0.0
    %224 = vmatprep.subr.mxu0 0.0
    %225 = vmatpush2.msra.mxu0 0.0
    %226 = vmatprep.subr.mxu0 0.0
    %227 = vmatpush2.msra.mxu0 0.0
    %228 = vmatprep.subr.mxu0 0.0
    %229 = vmatpush2.msra.mxu0 0.0
    %230 = vmatprep.subr.mxu0 0.0
    %231 = vmatpush2.msra.mxu0 0.0
    %232 = vmatprep.subr.mxu0 0.0
    %233 = vmatpush2.msra.mxu0 0.0
    %234 = vmatprep.subr.mxu0 0.0
    %235 = vmatpush2.msra.mxu0 0.0
    %236 = vmatprep.subr.mxu0 0.0
    %237 = vmatpush2.msra.mxu0 0.0
    %238 = vmatprep.subr.mxu0 0.0
    %239 = vmatpush2.msra.mxu0 0.0
    %240 = vmatprep.mubr.f32.mxu0 0.0
    %241 = vmatmul.mubr.f32.gmra.mxu0 %v104
    %v242 = vpop.f32.mrf.mxu0
    %v243 = vadd.f32 %v173, %v242
    %v244 = vpop.f32.mrf.mxu0
    %245 = vdwg.mxu0
    %v246 = vld [vmem:[%s4] sm:$0x1]
    %v248 = vlaneseq
    %v249 = vshrl.u32 %v248, 7
    %v250 = vsub.s32 0, %v249
    %v251 = vrot.slane %v246, %v250
    %v253 = vadd.f32 %v243, %v251
    %v254 = vtanh.pop %v253
    %255 = vst [vmem:[#allocation10] sm:$0xff] %v254
    // Predicated region
    $region38: #{tpu_custom_call.1} parent=1 // pred_check
      _
    $region39: #{tpu_custom_call.1} parent=1 // pred_check_branch
      %257 = sbr.rel (0) target = $region41
    $region40: #{tpu_custom_call.1} parent=1 // pred_region
      %s259 = ssub.s32 128, 128
      %260 = vsyncadd [#allocation4], %s259
      %s262 = sshll.u32 [#allocation10], 4
      %s263 = int_to_ptr.vmem [resolvable:$true] %s262
      %265 = dma.vmem_to_hbm [thread:$0]  %s263, 128, %s5, [#allocation4]
    $region41: #{tpu_custom_call.1} parent=1 // pred_fallthru
      _
    // Predicated region
    $region42: #{tpu_custom_call.1} parent=1 // pred_check
      _
    $region43: #{tpu_custom_call.1} parent=1 // pred_check_branch
      %267 = sbr.rel (0) target = $region45
    $region44: #{tpu_custom_call.1} parent=1 // pred_region
      %268 = dma.done [#allocation4], 128
    $region45: #{tpu_custom_call.1} parent=1 // pred_fallthru
      _
    %269 = vsyncpa [#allocation3], 1
    %270 = vsyncpa [#allocation6], 1
    %271 = vsyncpa [#allocation9], 1
    %272 = vsyncpa [#allocation4], 1

</llo_original>
